<compile_context>
chip_gen: v7x
topology: tpu7x:2x2x1
jax: 0.10.0
libtpu: 0.0.40
codegen_flags: <defaults>
</compile_context>

<pallas_src>
import jax
import jax.numpy as jnp
from jax.experimental import pallas as pl
from jax.experimental.pallas import tpu as pltpu


def _conv1x1_sigmoid_kernel(wb_ref, x_ref, o_ref):
    # wb_ref: (2,) scalars in SMEM -> [w, b]
    # x_ref, o_ref: (R, C) slab in VMEM
    w = wb_ref[0]
    b = wb_ref[1]
    # Fused affine + logistic; sigmoid lowers to the EUP path.
    o_ref[...] = jax.nn.sigmoid(x_ref[...] * w + b)


def conv1x1_sigmoid(x_nchw, weight, bias):
    """x_nchw: (N, C, H, W) f32 with N=C=1; weight: (1,1,1,1) f32; bias: (1,) f32."""
    n, c, h, w = x_nchw.shape
    assert n == 1 and c == 1, "this model has N=C=1"

    total = h * w
    # Lane-dense slab: 8 sublanes x (total/8) lanes when cleanly divisible,
    # otherwise fall back to the natural (H, W) layout.
    if total % (8 * 128) == 0:
        rows, cols = 8, total // 8
    else:
        rows, cols = h, w
    x2d = x_nchw.reshape(rows, cols)

    # Pack scalar weight and bias into one SMEM operand.
    wb = jnp.concatenate(
        [weight.reshape(1).astype(jnp.float32), bias.reshape(1).astype(jnp.float32)]
    )

    out2d = pl.pallas_call(
        _conv1x1_sigmoid_kernel,
        out_shape=jax.ShapeDtypeStruct((rows, cols), jnp.float32),
        grid_spec=pl.GridSpec(
            grid=(1,),
            in_specs=[
                pl.BlockSpec(memory_space=pltpu.SMEM),          # [w, b] scalars
                pl.BlockSpec((rows, cols), lambda i: (0, 0)),   # full x slab
            ],
            out_specs=pl.BlockSpec((rows, cols), lambda i: (0, 0)),
        ),
        compiler_params=pltpu.CompilerParams(
            dimension_semantics=("arbitrary",)
        ),
    )(wb, x2d)

    return out2d.reshape(n, c, h, w)


def reference(x_nchw, weight, bias):
    # Pure-JAX reference of the PyTorch forward.
    y = x_nchw * weight.reshape(()) + bias.reshape(())
    return jax.nn.sigmoid(y)


if __name__ == "__main__":
    key = jax.random.PRNGKey(0)
    kx, kw, kb = jax.random.split(key, 3)

    # Input matching torch.randn(1, 1, 128, 128)
    x1 = jax.random.normal(kx, (1, 1, 128, 128), dtype=jnp.float32)

    # Deterministic Conv2d(1, 1, 1) parameters (shapes as in nn.Conv2d):
    #   weight: (out_c=1, in_c=1, kH=1, kW=1), bias: (1,)
    weight = jax.random.uniform(kw, (1, 1, 1, 1), dtype=jnp.float32,
                                minval=-1.0, maxval=1.0)
    bias = jax.random.uniform(kb, (1,), dtype=jnp.float32,
                              minval=-1.0, maxval=1.0)

    out = conv1x1_sigmoid(x1, weight, bias)
    out = jax.block_until_ready(out)

    ref = reference(x1, weight, bias)
    assert out.shape == (1, 1, 128, 128)
    assert jnp.allclose(out, ref, atol=1e-6, rtol=1e-6)

    print("KERNEL_OK")
</pallas_src>

<mosaic_0001>
module attributes {stable_mosaic.version = 11 : i64} {
  func.func @_conv1x1_sigmoid_kernel(%arg0: i32, %arg1: memref<2xf32, #tpu.memory_space<smem>>, %arg2: memref<8x2048xf32, #tpu.memory_space<vmem>>, %arg3: memref<8x2048xf32, #tpu.memory_space<vmem>>) attributes {dimension_semantics = [#tpu.dimension_semantics<arbitrary>], iteration_bounds = array<i64: 1>, scalar_prefetch = 0 : i64, scratch_operands = 0 : i64, tpu.core_type = #tpu.core_type<tc>, window_params = [{transform_indices = @transform_0, window_bounds = array<i64: 2>}, {pipeline_mode = #tpu.pipeline_mode<synchronous>, transform_indices = @transform_1, window_bounds = array<i64: 8, 2048>}, {pipeline_mode = #tpu.pipeline_mode<synchronous>, transform_indices = @transform_2, window_bounds = array<i64: 8, 2048>}]} {
    %c0 = arith.constant 0 : index
    %0 = memref.load %arg1[%c0] : memref<2xf32, #tpu.memory_space<smem>>
    %c1 = arith.constant 1 : index
    %1 = memref.load %arg1[%c1] : memref<2xf32, #tpu.memory_space<smem>>
    %c0_0 = arith.constant 0 : index
    %c0_1 = arith.constant 0 : index
    %2 = vector.load %arg2[%c0_0, %c0_1] : memref<8x2048xf32, #tpu.memory_space<vmem>>, vector<8x2048xf32>
    %3 = vector.broadcast %0 : f32 to vector<8x2048xf32>
    %4 = arith.mulf %2, %3 : vector<8x2048xf32>
    %5 = vector.broadcast %1 : f32 to vector<8x2048xf32>
    %6 = arith.addf %4, %5 : vector<8x2048xf32>
    %7 = arith.negf %6 : vector<8x2048xf32>
    %8 = math.exp %7 : vector<8x2048xf32>
    %cst = arith.constant 1.000000e+00 : f32
    %9 = vector.broadcast %cst : f32 to vector<8x2048xf32>
    %10 = arith.addf %9, %8 : vector<8x2048xf32>
    %11 = arith.divf %9, %10 : vector<8x2048xf32>
    %c0_2 = arith.constant 0 : index
    %c0_3 = arith.constant 0 : index
    %12 = vector.load %arg3[%c0_2, %c0_3] : memref<8x2048xf32, #tpu.memory_space<vmem>>, vector<8x2048xf32>
    tpu.vector_store %arg3[%c0_2, %c0_3], %11 {strides = array<i32>} : memref<8x2048xf32, #tpu.memory_space<vmem>>, vector<8x2048xf32>,
    return
  }
  func.func @transform_0(%arg0: i32) -> i32 {
    %c0_i32 = arith.constant 0 : i32
    %c0_i32_0 = arith.constant 0 : i32
    return %c0_i32 : i32
  }
  func.func @transform_1(%arg0: i32) -> (i32, i32) {
    %c0_i32 = arith.constant 0 : i32
    %c0_i32_0 = arith.constant 0 : i32
    %c0_i32_1 = arith.constant 0 : i32
    return %c0_i32, %c0_i32_0 : i32, i32
  }
  func.func @transform_2(%arg0: i32) -> (i32, i32) {
    %c0_i32 = arith.constant 0 : i32
    %c0_i32_0 = arith.constant 0 : i32
    %c0_i32_1 = arith.constant 0 : i32
    return %c0_i32, %c0_i32_0 : i32, i32
  }
}

</mosaic_0001>

<llo_original>
// kernel: tpu_custom_call.1
$region0: #{tpu_custom_call.1}
  #allocation0 [shape = 'u32[]', space=smem, size = 0x4, offset = 0x4, fixed_abs, tag = 'smem constant byte address 0x4 - core index']
  #allocation1 [shape = 'u32[144,128]{1,0:T(1,128)}', space=vmem, size = 0x12000, scoped, tag = 'internal scratch']
  %s0 = inlined_call_operand.hbm [shape: f32[2], index: 0, kind: input, shape index: {}]
  %s1 = inlined_call_operand.hbm [shape: f32[8,2048], index: 1, kind: input, shape index: {}]
  %s2 = inlined_call_operand.hbm [shape: f32[8,2048], index: 2, kind: output, shape index: {}]
  %s3 = sld [smem:[#allocation0]]
  $region26: #{tpu_custom_call.1} parent=0
    _
  %s5 = ssub.s32 1, %s3
  %s6 = scalar_select 0, %s5, %s3
  $region1: #{tpu_custom_call.1} parent=0
    #allocation2 [shape = 'u8[512]{0}', space=smem, size = 0x200, scoped, tag = 'input window, operand 0, single buffered']
    #allocation3 [shape = 's32[1]{0}', space=sflag, size = 0x4, scoped, tag = 'scoped memory for tpu_custom_call.1']
    #allocation4 [shape = 's32[1]{0}', space=sflag, size = 0x4, scoped, tag = 'scoped memory for tpu_custom_call.1']
    #allocation5 [shape = 's32[1]{0}', space=sflag, size = 0x4, scoped, tag = 'scoped memory for tpu_custom_call.1']
    #allocation6 [shape = 'u8[65536]{0}', space=vmem, size = 0x10000, scoped, tag = 'input window, operand 1, single buffered']
    #allocation7 [shape = 'u8[65536]{0}', space=vmem, size = 0x10000, scoped, tag = 'output window, operand 0, single buffered']
    %7 = vsyncpa [#allocation5], 0
    %8 = vsyncpa [#allocation3], 0
    %9 = vsyncpa [#allocation4], 0
    // Predicated region
    $region2: #{tpu_custom_call.1} parent=1 // pred_check
      _
    $region3: #{tpu_custom_call.1} parent=1 // pred_check_branch
      %11 = sbr.rel (0) target = $region5
    $region4: #{tpu_custom_call.1} parent=1 // pred_region
      %s13 = ssub.s32 16, 16
      %14 = vsyncadd [#allocation5], %s13
      %17 = dma.hbm_to_smem %s0, 16, [#allocation2], [#allocation5]
    $region5: #{tpu_custom_call.1} parent=1 // pred_fallthru
      _
    // Predicated region
    $region6: #{tpu_custom_call.1} parent=1 // pred_check
      _
    $region7: #{tpu_custom_call.1} parent=1 // pred_check_branch
      %19 = sbr.rel (0) target = $region9
    $region8: #{tpu_custom_call.1} parent=1 // pred_region
      %s21 = ssub.s32 2048, 2048
      %22 = vsyncadd [#allocation3], %s21
      %s24 = sshll.u32 [#allocation6], 4
      %s25 = int_to_ptr.vmem [resolvable:$true] %s24
      %27 = dma.hbm_to_vmem [thread:$0]  %s1, 2048, %s25, [#allocation3]
    $region9: #{tpu_custom_call.1} parent=1 // pred_fallthru
      _
    // Predicated region
    $region10: #{tpu_custom_call.1} parent=1 // pred_check
      _
    $region11: #{tpu_custom_call.1} parent=1 // pred_check_branch
      %29 = sbr.rel (0) target = $region13
    $region12: #{tpu_custom_call.1} parent=1 // pred_region
      %30 = dma.done [#allocation5], 16
    $region13: #{tpu_custom_call.1} parent=1 // pred_fallthru
      _
    // Predicated region
    $region14: #{tpu_custom_call.1} parent=1 // pred_check
      _
    $region15: #{tpu_custom_call.1} parent=1 // pred_check_branch
      %32 = sbr.rel (0) target = $region17
    $region16: #{tpu_custom_call.1} parent=1 // pred_region
      %33 = dma.done [#allocation3], 2048
    $region17: #{tpu_custom_call.1} parent=1 // pred_fallthru
      _
    %34 = sfence
    %s35 = sld [smem:[#allocation2]]
    %s36 = sld [smem:[#allocation2 + $0x1]]
    %v37 = vld [vmem:[#allocation6] sm:$0xff]
    %v38 = vld [vmem:[#allocation6 + $0x8] sm:$0xff]
    %v39 = vld [vmem:[#allocation6 + $0x10] sm:$0xff]
    %v40 = vld [vmem:[#allocation6 + $0x18] sm:$0xff]
    %v41 = vld [vmem:[#allocation6 + $0x20] sm:$0xff]
    %v42 = vld [vmem:[#allocation6 + $0x28] sm:$0xff]
    %v43 = vld [vmem:[#allocation6 + $0x30] sm:$0xff]
    %v44 = vld [vmem:[#allocation6 + $0x38] sm:$0xff]
    %v45 = vld [vmem:[#allocation6 + $0x40] sm:$0xff]
    %v46 = vld [vmem:[#allocation6 + $0x48] sm:$0xff]
    %v47 = vld [vmem:[#allocation6 + $0x50] sm:$0xff]
    %v48 = vld [vmem:[#allocation6 + $0x58] sm:$0xff]
    %v49 = vld [vmem:[#allocation6 + $0x60] sm:$0xff]
    %v50 = vld [vmem:[#allocation6 + $0x68] sm:$0xff]
    %v51 = vld [vmem:[#allocation6 + $0x70] sm:$0xff]
    %v52 = vld [vmem:[#allocation6 + $0x78] sm:$0xff]
    %v53 = vstv %s35
    %v54 = vmul.f32 %v37, %v53
    %v55 = vmul.f32 %v38, %v53
    %v56 = vmul.f32 %v39, %v53
    %v57 = vmul.f32 %v40, %v53
    %v58 = vmul.f32 %v41, %v53
    %v59 = vmul.f32 %v42, %v53
    %v60 = vmul.f32 %v43, %v53
    %v61 = vmul.f32 %v44, %v53
    %v62 = vmul.f32 %v45, %v53
    %v63 = vmul.f32 %v46, %v53
    %v64 = vmul.f32 %v47, %v53
    %v65 = vmul.f32 %v48, %v53
    %v66 = vmul.f32 %v49, %v53
    %v67 = vmul.f32 %v50, %v53
    %v68 = vmul.f32 %v51, %v53
    %v69 = vmul.f32 %v52, %v53
    %v70 = vstv %s36
    %v71 = vadd.f32 %v54, %v70
    %v72 = vadd.f32 %v55, %v70
    %v73 = vadd.f32 %v56, %v70
    %v74 = vadd.f32 %v57, %v70
    %v75 = vadd.f32 %v58, %v70
    %v76 = vadd.f32 %v59, %v70
    %v77 = vadd.f32 %v60, %v70
    %v78 = vadd.f32 %v61, %v70
    %v79 = vadd.f32 %v62, %v70
    %v80 = vadd.f32 %v63, %v70
    %v81 = vadd.f32 %v64, %v70
    %v82 = vadd.f32 %v65, %v70
    %v83 = vadd.f32 %v66, %v70
    %v84 = vadd.f32 %v67, %v70
    %v85 = vadd.f32 %v68, %v70
    %v86 = vadd.f32 %v69, %v70
    %v87 = vxor.u32 %v71, 2147483648
    %v88 = vxor.u32 %v72, 2147483648
    %v89 = vxor.u32 %v73, 2147483648
    %v90 = vxor.u32 %v74, 2147483648
    %v91 = vxor.u32 %v75, 2147483648
    %v92 = vxor.u32 %v76, 2147483648
    %v93 = vxor.u32 %v77, 2147483648
    %v94 = vxor.u32 %v78, 2147483648
    %v95 = vxor.u32 %v79, 2147483648
    %v96 = vxor.u32 %v80, 2147483648
    %v97 = vxor.u32 %v81, 2147483648
    %v98 = vxor.u32 %v82, 2147483648
    %v99 = vxor.u32 %v83, 2147483648
    %v100 = vxor.u32 %v84, 2147483648
    %v101 = vxor.u32 %v85, 2147483648
    %v102 = vxor.u32 %v86, 2147483648
    %v103 = vmul.f32 %v87, 1.442695
    %v104 = vpow.pop %v103
    %v105 = vmul.f32 %v88, 1.442695
    %v106 = vpow.pop %v105
    %v107 = vmul.f32 %v89, 1.442695
    %v108 = vpow.pop %v107
    %v109 = vmul.f32 %v90, 1.442695
    %v110 = vpow.pop %v109
    %v111 = vmul.f32 %v91, 1.442695
    %v112 = vpow.pop %v111
    %v113 = vmul.f32 %v92, 1.442695
    %v114 = vpow.pop %v113
    %v115 = vmul.f32 %v93, 1.442695
    %v116 = vpow.pop %v115
    %v117 = vmul.f32 %v94, 1.442695
    %v118 = vpow.pop %v117
    %v119 = vmul.f32 %v95, 1.442695
    %v120 = vpow.pop %v119
    %v121 = vmul.f32 %v96, 1.442695
    %v122 = vpow.pop %v121
    %v123 = vmul.f32 %v97, 1.442695
    %v124 = vpow.pop %v123
    %v125 = vmul.f32 %v98, 1.442695
    %v126 = vpow.pop %v125
    %v127 = vmul.f32 %v99, 1.442695
    %v128 = vpow.pop %v127
    %v129 = vmul.f32 %v100, 1.442695
    %v130 = vpow.pop %v129
    %v131 = vmul.f32 %v101, 1.442695
    %v132 = vpow.pop %v131
    %v133 = vmul.f32 %v102, 1.442695
    %v134 = vpow.pop %v133
    %v135 = vadd.f32 %v104, 1.0
    %v136 = vadd.f32 %v106, 1.0
    %v137 = vadd.f32 %v108, 1.0
    %v138 = vadd.f32 %v110, 1.0
    %v139 = vadd.f32 %v112, 1.0
    %v140 = vadd.f32 %v114, 1.0
    %v141 = vadd.f32 %v116, 1.0
    %v142 = vadd.f32 %v118, 1.0
    %v143 = vadd.f32 %v120, 1.0
    %v144 = vadd.f32 %v122, 1.0
    %v145 = vadd.f32 %v124, 1.0
    %v146 = vadd.f32 %v126, 1.0
    %v147 = vadd.f32 %v128, 1.0
    %v148 = vadd.f32 %v130, 1.0
    %v149 = vadd.f32 %v132, 1.0
    %v150 = vadd.f32 %v134, 1.0
    %v151 = vrcp.pop %v135
    %v152 = vmul.f32 1.0, %v151
    %v153 = vrcp.pop %v136
    %v154 = vmul.f32 1.0, %v153
    %v155 = vrcp.pop %v137
    %v156 = vmul.f32 1.0, %v155
    %v157 = vrcp.pop %v138
    %v158 = vmul.f32 1.0, %v157
    %v159 = vrcp.pop %v139
    %v160 = vmul.f32 1.0, %v159
    %v161 = vrcp.pop %v140
    %v162 = vmul.f32 1.0, %v161
    %v163 = vrcp.pop %v141
    %v164 = vmul.f32 1.0, %v163
    %v165 = vrcp.pop %v142
    %v166 = vmul.f32 1.0, %v165
    %v167 = vrcp.pop %v143
    %v168 = vmul.f32 1.0, %v167
    %v169 = vrcp.pop %v144
    %v170 = vmul.f32 1.0, %v169
    %v171 = vrcp.pop %v145
    %v172 = vmul.f32 1.0, %v171
    %v173 = vrcp.pop %v146
    %v174 = vmul.f32 1.0, %v173
    %v175 = vrcp.pop %v147
    %v176 = vmul.f32 1.0, %v175
    %v177 = vrcp.pop %v148
    %v178 = vmul.f32 1.0, %v177
    %v179 = vrcp.pop %v149
    %v180 = vmul.f32 1.0, %v179
    %v181 = vrcp.pop %v150
    %v182 = vmul.f32 1.0, %v181
    %183 = vst [vmem:[#allocation7] sm:$0xff] %v152
    %184 = vst [vmem:[#allocation7 + $0x8] sm:$0xff] %v154
    %185 = vst [vmem:[#allocation7 + $0x10] sm:$0xff] %v156
    %186 = vst [vmem:[#allocation7 + $0x18] sm:$0xff] %v158
    %187 = vst [vmem:[#allocation7 + $0x20] sm:$0xff] %v160
    %188 = vst [vmem:[#allocation7 + $0x28] sm:$0xff] %v162
    %189 = vst [vmem:[#allocation7 + $0x30] sm:$0xff] %v164
    %190 = vst [vmem:[#allocation7 + $0x38] sm:$0xff] %v166
    %191 = vst [vmem:[#allocation7 + $0x40] sm:$0xff] %v168
    %192 = vst [vmem:[#allocation7 + $0x48] sm:$0xff] %v170
    %193 = vst [vmem:[#allocation7 + $0x50] sm:$0xff] %v172
    %194 = vst [vmem:[#allocation7 + $0x58] sm:$0xff] %v174
    %195 = vst [vmem:[#allocation7 + $0x60] sm:$0xff] %v176
    %196 = vst [vmem:[#allocation7 + $0x68] sm:$0xff] %v178
    %197 = vst [vmem:[#allocation7 + $0x70] sm:$0xff] %v180
    %198 = vst [vmem:[#allocation7 + $0x78] sm:$0xff] %v182
    // Predicated region
    $region18: #{tpu_custom_call.1} parent=1 // pred_check
      _
    $region19: #{tpu_custom_call.1} parent=1 // pred_check_branch
      %200 = sbr.rel (0) target = $region21
    $region20: #{tpu_custom_call.1} parent=1 // pred_region
      %s202 = ssub.s32 2048, 2048
      %203 = vsyncadd [#allocation4], %s202
      %s205 = sshll.u32 [#allocation7], 4
      %s206 = int_to_ptr.vmem [resolvable:$true] %s205
      %208 = dma.vmem_to_hbm [thread:$0]  %s206, 2048, %s2, [#allocation4]
    $region21: #{tpu_custom_call.1} parent=1 // pred_fallthru
      _
    // Predicated region
    $region22: #{tpu_custom_call.1} parent=1 // pred_check
      _
    $region23: #{tpu_custom_call.1} parent=1 // pred_check_branch
      %210 = sbr.rel (0) target = $region25
    $region24: #{tpu_custom_call.1} parent=1 // pred_region
      %211 = dma.done [#allocation4], 2048
    $region25: #{tpu_custom_call.1} parent=1 // pred_fallthru
      _
    %212 = vsyncpa [#allocation3], 1
    %213 = vsyncpa [#allocation4], 1
    %214 = vsyncpa [#allocation5], 1

</llo_original>
